<compile_context>
chip_gen: v7x
topology: tpu7x:2x2x1
jax: 0.10.0
libtpu: 0.0.40
codegen_flags: <defaults>
</compile_context>

<pallas_src>
import jax
import jax.numpy as jnp
from jax.experimental import pallas as pl
from jax.experimental.pallas import tpu as pltpu

INPUT_DIM = 180   # n_feature, matches the tutorial's INPUT_DIM
N_HIDDEN = 32
N_OUTPUT = 2
BATCH = 8

SUBLANE = 8


def _round_up(x, m):
    return (x + m - 1) // m * m


def mlp_kernel(x_ref, w1_ref, b1_ref, w2_ref, b2_ref, o_ref):
    # hidden = relu(x @ W1 + b1)   -- MXU matmul (f32 acc) + VPU bias/relu.
    h = jnp.dot(x_ref[...], w1_ref[...], preferred_element_type=jnp.float32)
    h = jnp.maximum(h + b1_ref[...], 0.0)          # (TB, H) + (1, H) broadcast
    # out = hidden @ W2 + b2       -- tiny N=2; masked vst on 2 lanes is cheap
    out = jnp.dot(h, w2_ref[...], preferred_element_type=jnp.float32)
    o_ref[...] = (out + b2_ref[...]).astype(o_ref.dtype)


def net_forward(x, w1, b1, w2, b2, *, block_b=512):
    """x: (B, F); w1: (F, H); b1: (1, H); w2: (H, O); b2: (1, O).

    Weights are stored pre-transposed vs. PyTorch (w1: (F, H), w2: (H, O)).
    No host-side pad/slice passes; ragged batch tails are masked by Pallas.
    """
    B, F = x.shape
    H = w1.shape[1]
    O = w2.shape[1]
    block_b = _round_up(block_b, SUBLANE)

    out_shape = jax.ShapeDtypeStruct((B, O), jnp.float32)

    if B <= block_b:
        # Single block, no grid: no per-step pipeline prologue/epilogue. The
        # whole problem (well under 1 MB) sits in VMEM for one invocation.
        return pl.pallas_call(
            mlp_kernel,
            out_shape=out_shape,
            in_specs=[pl.BlockSpec(memory_space=pltpu.MemorySpace.VMEM)] * 5,
            out_specs=pl.BlockSpec(memory_space=pltpu.MemorySpace.VMEM),
        )(x, w1, b1, w2, b2)

    # Batched path: batch is a "parallel" grid axis (shards across both
    # TensorCores on v7x). Weight/bias index_maps return block (0, 0) every
    # step, so they stay VMEM-resident and are not re-DMA'd per step.
    # grid uses cdiv: the ragged last tile's out-of-bounds rows are dropped on
    # writeback, so no batch padding (and no dead matmul rows reaching HBM).
    grid = (pl.cdiv(B, block_b),)
    return pl.pallas_call(
        mlp_kernel,
        out_shape=out_shape,
        grid=grid,
        in_specs=[
            pl.BlockSpec((block_b, F), lambda i: (i, 0)),   # F == full dim -> legal
            pl.BlockSpec((F, H), lambda i: (0, 0)),
            pl.BlockSpec((1, H), lambda i: (0, 0)),
            pl.BlockSpec((H, O), lambda i: (0, 0)),
            pl.BlockSpec((1, O), lambda i: (0, 0)),
        ],
        out_specs=pl.BlockSpec((block_b, O), lambda i: (i, 0)),  # O == full dim
        compiler_params=pltpu.CompilerParams(
            dimension_semantics=("parallel",),
        ),
    )(x, w1, b1, w2, b2)


if __name__ == "__main__":
    key = jax.random.PRNGKey(0)
    kx0, kx1, kw1, kb1, kw2, kb2 = jax.random.split(key, 6)

    # Deterministic parameter init (PyTorch Linear-style uniform bounds),
    # stored pre-transposed: w1 (F, H), w2 (H, O).
    bound1 = 1.0 / (INPUT_DIM ** 0.5)
    w1 = jax.random.uniform(kw1, (INPUT_DIM, N_HIDDEN), jnp.float32, -bound1, bound1)
    b1 = jax.random.uniform(kb1, (1, N_HIDDEN), jnp.float32, -bound1, bound1)
    bound2 = 1.0 / (N_HIDDEN ** 0.5)
    w2 = jax.random.uniform(kw2, (N_HIDDEN, N_OUTPUT), jnp.float32, -bound2, bound2)
    b2 = jax.random.uniform(kb2, (1, N_OUTPUT), jnp.float32, -bound2, bound2)

    def reference(x):
        return jnp.maximum(x @ w1 + b1, 0.0) @ w2 + b2

    # --- small batch (tutorial-like two-Gaussian-cluster data): gridless path
    half = BATCH // 2
    x_small = jnp.concatenate(
        [2.0 + jax.random.normal(kx0, (half, INPUT_DIM), dtype=jnp.float32),
         -2.0 + jax.random.normal(kx1, (BATCH - half, INPUT_DIM), dtype=jnp.float32)],
        axis=0)
    out_small = net_forward(x_small, w1, b1, w2, b2)
    jax.block_until_ready(out_small)
    assert out_small.shape == (BATCH, N_OUTPUT)
    assert jnp.allclose(out_small, reference(x_small), atol=1e-4, rtol=1e-4)

    # --- larger batch: 2 even "parallel" grid steps (both TCs on v7x)
    B_BIG = 1024
    x_big = jax.random.normal(kx0, (B_BIG, INPUT_DIM), dtype=jnp.float32)
    out_big = net_forward(x_big, w1, b1, w2, b2, block_b=512)
    jax.block_until_ready(out_big)
    assert out_big.shape == (B_BIG, N_OUTPUT)
    assert jnp.allclose(out_big, reference(x_big), atol=1e-4, rtol=1e-4)

    # --- ragged batch: exercises the automatically masked last tile
    B_RAG = 1000
    x_rag = jax.random.normal(kx1, (B_RAG, INPUT_DIM), dtype=jnp.float32)
    out_rag = net_forward(x_rag, w1, b1, w2, b2, block_b=512)
    jax.block_until_ready(out_rag)
    assert out_rag.shape == (B_RAG, N_OUTPUT)
    assert jnp.allclose(out_rag, reference(x_rag), atol=1e-4, rtol=1e-4)

    print("KERNEL_OK")
</pallas_src>

<mosaic_0001>
module attributes {stable_mosaic.version = 11 : i64} {
  func.func @mlp_kernel(%arg0: memref<8x180xf32, #tpu.memory_space<vmem>>, %arg1: memref<180x32xf32, #tpu.memory_space<vmem>>, %arg2: memref<1x32xf32, #tpu.memory_space<vmem>>, %arg3: memref<32x2xf32, #tpu.memory_space<vmem>>, %arg4: memref<1x2xf32, #tpu.memory_space<vmem>>, %arg5: memref<8x2xf32, #tpu.memory_space<vmem>>) attributes {dimension_semantics = [], scalar_prefetch = 0 : i64, scratch_operands = 0 : i64, tpu.core_type = #tpu.core_type<tc>} {
    %c0 = arith.constant 0 : index
    %c0_0 = arith.constant 0 : index
    %0 = vector.load %arg0[%c0, %c0_0] : memref<8x180xf32, #tpu.memory_space<vmem>>, vector<8x180xf32>
    %c0_1 = arith.constant 0 : index
    %c0_2 = arith.constant 0 : index
    %1 = vector.load %arg1[%c0_1, %c0_2] : memref<180x32xf32, #tpu.memory_space<vmem>>, vector<180x32xf32>
    %cst = arith.constant dense<0.000000e+00> : vector<8x32xf32>
    %2 = tpu.matmul %0, %1, %cst {dimension_numbers = #tpu.dot_dimension_numbers<[1], [0], [0], [1], [0, 0, 1, 1], [], []>} : vector<8x180xf32>, vector<180x32xf32>, vector<8x32xf32> -> vector<8x32xf32>
    %c0_3 = arith.constant 0 : index
    %c0_4 = arith.constant 0 : index
    %3 = vector.load %arg2[%c0_3, %c0_4] : memref<1x32xf32, #tpu.memory_space<vmem>>, vector<1x32xf32>
    %4 = vector.broadcast %3 : vector<1x32xf32> to vector<8x32xf32>
    %5 = arith.addf %2, %4 : vector<8x32xf32>
    %cst_5 = arith.constant 0.000000e+00 : f32
    %6 = vector.broadcast %cst_5 : f32 to vector<8x32xf32>
    %7 = arith.maximumf %5, %6 : vector<8x32xf32>
    %c0_6 = arith.constant 0 : index
    %c0_7 = arith.constant 0 : index
    %8 = vector.load %arg3[%c0_6, %c0_7] : memref<32x2xf32, #tpu.memory_space<vmem>>, vector<32x2xf32>
    %cst_8 = arith.constant dense<0.000000e+00> : vector<8x2xf32>
    %9 = tpu.matmul %7, %8, %cst_8 {dimension_numbers = #tpu.dot_dimension_numbers<[1], [0], [0], [1], [0, 0, 1, 1], [], []>} : vector<8x32xf32>, vector<32x2xf32>, vector<8x2xf32> -> vector<8x2xf32>
    %c0_9 = arith.constant 0 : index
    %c0_10 = arith.constant 0 : index
    %10 = vector.load %arg4[%c0_9, %c0_10] : memref<1x2xf32, #tpu.memory_space<vmem>>, vector<1x2xf32>
    %11 = vector.broadcast %10 : vector<1x2xf32> to vector<8x2xf32>
    %12 = arith.addf %9, %11 : vector<8x2xf32>
    %c0_11 = arith.constant 0 : index
    %c0_12 = arith.constant 0 : index
    %13 = vector.load %arg5[%c0_11, %c0_12] : memref<8x2xf32, #tpu.memory_space<vmem>>, vector<8x2xf32>
    tpu.vector_store %arg5[%c0_11, %c0_12], %12 {strides = array<i32>} : memref<8x2xf32, #tpu.memory_space<vmem>>, vector<8x2xf32>,
    return
  }
}

</mosaic_0001>

<llo_original>
// kernel: tpu_custom_call.1
$region0: #{tpu_custom_call.1}
  #allocation0 [shape = 'u32[]', space=smem, size = 0x4, offset = 0x4, fixed_abs, tag = 'smem constant byte address 0x4 - core index']
  #allocation1 [shape = 'u32[144,128]{1,0:T(1,128)}', space=vmem, size = 0x12000, scoped, tag = 'internal scratch']
  %s0 = inlined_call_operand.vmem [shape: f32[8,180], index: 0, kind: input, shape index: {}]
  %s1 = inlined_call_operand.vmem [shape: f32[180,32], index: 1, kind: input, shape index: {}]
  %s2 = inlined_call_operand.vmem [shape: f32[1,32], index: 2, kind: input, shape index: {}]
  %s3 = inlined_call_operand.vmem [shape: f32[32,2], index: 3, kind: input, shape index: {}]
  %s4 = inlined_call_operand.vmem [shape: f32[1,2], index: 4, kind: input, shape index: {}]
  %s5 = inlined_call_operand.vmem [shape: f32[8,2], index: 5, kind: output, shape index: {}]
  %s6 = sld [smem:[#allocation0]]
  $region30: #{tpu_custom_call.1} parent=0
    _
  %s8 = ssub.s32 1, %s6
  %s9 = scalar_select 0, %s8, %s6
  // Predicated region
  $region2: #{tpu_custom_call.1} parent=0 // pred_check
    _
  $region3: #{tpu_custom_call.1} parent=0 // pred_check_branch
    %11 = sbr.rel (0) target = $region5
  $region4: #{tpu_custom_call.1} parent=0 // pred_region
    _
  $region5: #{tpu_custom_call.1} parent=0 // pred_fallthru
    _
  // Predicated region
  $region6: #{tpu_custom_call.1} parent=0 // pred_check
    _
  $region7: #{tpu_custom_call.1} parent=0 // pred_check_branch
    %13 = sbr.rel (0) target = $region9
  $region8: #{tpu_custom_call.1} parent=0 // pred_region
    _
  $region9: #{tpu_custom_call.1} parent=0 // pred_fallthru
    _
  // Predicated region
  $region10: #{tpu_custom_call.1} parent=0 // pred_check
    _
  $region11: #{tpu_custom_call.1} parent=0 // pred_check_branch
    %15 = sbr.rel (0) target = $region13
  $region12: #{tpu_custom_call.1} parent=0 // pred_region
    _
  $region13: #{tpu_custom_call.1} parent=0 // pred_fallthru
    _
  // Predicated region
  $region14: #{tpu_custom_call.1} parent=0 // pred_check
    _
  $region15: #{tpu_custom_call.1} parent=0 // pred_check_branch
    %17 = sbr.rel (0) target = $region17
  $region16: #{tpu_custom_call.1} parent=0 // pred_region
    _
  $region17: #{tpu_custom_call.1} parent=0 // pred_fallthru
    _
  // Predicated region
  $region18: #{tpu_custom_call.1} parent=0 // pred_check
    _
  $region19: #{tpu_custom_call.1} parent=0 // pred_check_branch
    %19 = sbr.rel (0) target = $region21
  $region20: #{tpu_custom_call.1} parent=0 // pred_region
    _
  $region21: #{tpu_custom_call.1} parent=0 // pred_fallthru
    _
  %v20 = vld [vmem:[%s0] sm:$0xff]
  %v21 = vld [vmem:[%s0 + $0x8] sm:$0xff]
  %v22 = vld [vmem:[%s1] sm:$0xff]
  %v23 = vld [vmem:[%s1 + $0x8] sm:$0xff]
  %v24 = vld [vmem:[%s1 + $0x10] sm:$0xff]
  %v25 = vld [vmem:[%s1 + $0x18] sm:$0xff]
  %v26 = vld [vmem:[%s1 + $0x20] sm:$0xff]
  %v27 = vld [vmem:[%s1 + $0x28] sm:$0xff]
  %v28 = vld [vmem:[%s1 + $0x30] sm:$0xff]
  %v29 = vld [vmem:[%s1 + $0x38] sm:$0xff]
  %v30 = vld [vmem:[%s1 + $0x40] sm:$0xff]
  %v31 = vld [vmem:[%s1 + $0x48] sm:$0xff]
  %v32 = vld [vmem:[%s1 + $0x50] sm:$0xff]
  %v33 = vld [vmem:[%s1 + $0x58] sm:$0xff]
  %v34 = vld [vmem:[%s1 + $0x60] sm:$0xff]
  %v35 = vld [vmem:[%s1 + $0x68] sm:$0xff]
  %v36 = vld [vmem:[%s1 + $0x70] sm:$0xff]
  %v37 = vld [vmem:[%s1 + $0x78] sm:$0xff]
  %v38 = vld [vmem:[%s1 + $0x80] sm:$0xff]
  %v39 = vld [vmem:[%s1 + $0x88] sm:$0xff]
  %v40 = vld [vmem:[%s1 + $0x90] sm:$0xff]
  %v41 = vld [vmem:[%s1 + $0x98] sm:$0xff]
  %v42 = vld [vmem:[%s1 + $0xa0] sm:$0xff]
  %v43 = vld [vmem:[%s1 + $0xa8] sm:$0xff]
  %v44 = vld [vmem:[%s1 + $0xb0] sm:$0xf]
  %v45 = vld [vmem:[%s2] sm:$0x1]
  %v47 = vlaneseq
  %v48 = vshrl.u32 %v47, 7
  %v49 = vsub.s32 0, %v48
  %v50 = vrot.slane %v45, %v49
  %vm52 = vcmask 424960
  %v54 = vsel %vm52, %v21, 0
  %vm56 = vcmask 1043456
  %v58 = vsel %vm56, %v44, 0
  %60 = vmatprep.subr.mxu0 0.0
  %61 = vmatpush1.msra.mxu0 %v22
  %62 = vmatprep.subr.mxu0 0.0
  %63 = vmatpush1.msra.mxu0 %v23
  %64 = vmatprep.subr.mxu0 0.0
  %65 = vmatpush1.msra.mxu0 %v24
  %66 = vmatprep.subr.mxu0 0.0
  %67 = vmatpush1.msra.mxu0 %v25
  %68 = vmatprep.subr.mxu0 0.0
  %69 = vmatpush1.msra.mxu0 %v26
  %70 = vmatprep.subr.mxu0 0.0
  %71 = vmatpush1.msra.mxu0 %v27
  %72 = vmatprep.subr.mxu0 0.0
  %73 = vmatpush1.msra.mxu0 %v28
  %74 = vmatprep.subr.mxu0 0.0
  %75 = vmatpush1.msra.mxu0 %v29
  %76 = vmatprep.subr.mxu0 0.0
  %77 = vmatpush1.msra.mxu0 %v30
  %78 = vmatprep.subr.mxu0 0.0
  %79 = vmatpush1.msra.mxu0 %v31
  %80 = vmatprep.subr.mxu0 0.0
  %81 = vmatpush1.msra.mxu0 %v32
  %82 = vmatprep.subr.mxu0 0.0
  %83 = vmatpush1.msra.mxu0 %v33
  %84 = vmatprep.subr.mxu0 0.0
  %85 = vmatpush1.msra.mxu0 %v34
  %86 = vmatprep.subr.mxu0 0.0
  %87 = vmatpush1.msra.mxu0 %v35
  %88 = vmatprep.subr.mxu0 0.0
  %89 = vmatpush1.msra.mxu0 %v36
  %90 = vmatprep.subr.mxu0 0.0
  %91 = vmatpush1.msra.mxu0 %v37
  %92 = vmatprep.subr.mxu0 0.0
  %93 = vmatpush1.msra.mxu0 %v38
  %94 = vmatprep.subr.mxu0 0.0
  %95 = vmatpush1.msra.mxu0 %v39
  %96 = vmatprep.subr.mxu0 0.0
  %97 = vmatpush1.msra.mxu0 %v40
  %98 = vmatprep.subr.mxu0 0.0
  %99 = vmatpush1.msra.mxu0 %v41
  %100 = vmatprep.subr.mxu0 0.0
  %101 = vmatpush1.msra.mxu0 %v42
  %102 = vmatprep.subr.mxu0 0.0
  %103 = vmatpush1.msra.mxu0 %v43
  %104 = vmatprep.subr.mxu0 0.0
  %105 = vmatpush1.msra.mxu0 %v58
  %106 = vmatprep.subr.mxu0 0.0
  %107 = vmatpush1.msra.mxu0 0.0
  %108 = vmatprep.subr.mxu0 0.0
  %109 = vmatpush1.msra.mxu0 0.0
  %110 = vmatprep.subr.mxu0 0.0
  %111 = vmatpush1.msra.mxu0 0.0
  %112 = vmatprep.subr.mxu0 0.0
  %113 = vmatpush1.msra.mxu0 0.0
  %114 = vmatprep.subr.mxu0 0.0
  %115 = vmatpush1.msra.mxu0 0.0
  %116 = vmatprep.subr.mxu0 0.0
  %117 = vmatpush1.msra.mxu0 0.0
  %118 = vmatprep.subr.mxu0 0.0
  %119 = vmatpush1.msra.mxu0 0.0
  %120 = vmatprep.subr.mxu0 0.0
  %121 = vmatpush1.msra.mxu0 0.0
  %122 = vmatprep.subr.mxu0 0.0
  %123 = vmatpush1.msra.mxu0 0.0
  %124 = vmatprep.mubr.f32.mxu0 %v54
  %125 = vmatmul.mubr.f32.gmra.mrb[0].mxu0 %v20
  %v126 = vpop.f32.mrb[0].mxu0
  %v127 = vadd.f32 %v50, %v126
  %v128 = vpop.f32.mrb[0].mxu0
  %129 = vdwg.mxu0
  %v130 = vmax.f32 %v127, 0.0
  %v131 = vld [vmem:[%s3] sm:$0xff]
  %v132 = vld [vmem:[%s3 + $0x8] sm:$0xff]
  %v133 = vld [vmem:[%s3 + $0x10] sm:$0xff]
  %v134 = vld [vmem:[%s3 + $0x18] sm:$0xff]
  %v135 = vld [vmem:[%s4] sm:$0x1]
  %v137 = vlaneseq
  %v138 = vshrl.u32 %v137, 7
  %v139 = vsub.s32 0, %v138
  %v140 = vrot.slane %v135, %v139
  %vm142 = vcmask 261120
  %v144 = vsel %vm142, %v130, 0
  %146 = vmatprep.subr.mxu0 0.0
  %147 = vmatpush1.msra.mxu0 %v131
  %148 = vmatprep.subr.mxu0 0.0
  %149 = vmatpush1.msra.mxu0 %v132
  %150 = vmatprep.subr.mxu0 0.0
  %151 = vmatpush1.msra.mxu0 %v133
  %152 = vmatprep.subr.mxu0 0.0
  %153 = vmatpush1.msra.mxu0 %v134
  %154 = vmatprep.subr.mxu0 0.0
  %155 = vmatpush1.msra.mxu0 0.0
  %156 = vmatprep.subr.mxu0 0.0
  %157 = vmatpush1.msra.mxu0 0.0
  %158 = vmatprep.subr.mxu0 0.0
  %159 = vmatpush1.msra.mxu0 0.0
  %160 = vmatprep.subr.mxu0 0.0
  %161 = vmatpush1.msra.mxu0 0.0
  %162 = vmatprep.subr.mxu0 0.0
  %163 = vmatpush1.msra.mxu0 0.0
  %164 = vmatprep.subr.mxu0 0.0
  %165 = vmatpush1.msra.mxu0 0.0
  %166 = vmatprep.subr.mxu0 0.0
  %167 = vmatpush1.msra.mxu0 0.0
  %168 = vmatprep.subr.mxu0 0.0
  %169 = vmatpush1.msra.mxu0 0.0
  %170 = vmatprep.subr.mxu0 0.0
  %171 = vmatpush1.msra.mxu0 0.0
  %172 = vmatprep.subr.mxu0 0.0
  %173 = vmatpush1.msra.mxu0 0.0
  %174 = vmatprep.subr.mxu0 0.0
  %175 = vmatpush1.msra.mxu0 0.0
  %176 = vmatprep.subr.mxu0 0.0
  %177 = vmatpush1.msra.mxu0 0.0
  %178 = vmatprep.subr.mxu0 0.0
  %179 = vmatpush1.msra.mxu0 0.0
  %180 = vmatprep.subr.mxu0 0.0
  %181 = vmatpush1.msra.mxu0 0.0
  %182 = vmatprep.subr.mxu0 0.0
  %183 = vmatpush1.msra.mxu0 0.0
  %184 = vmatprep.subr.mxu0 0.0
  %185 = vmatpush1.msra.mxu0 0.0
  %186 = vmatprep.subr.mxu0 0.0
  %187 = vmatpush1.msra.mxu0 0.0
  %188 = vmatprep.subr.mxu0 0.0
  %189 = vmatpush1.msra.mxu0 0.0
  %190 = vmatprep.subr.mxu0 0.0
  %191 = vmatpush1.msra.mxu0 0.0
  %192 = vmatprep.subr.mxu0 0.0
  %193 = vmatpush1.msra.mxu0 0.0
  %194 = vmatprep.subr.mxu0 0.0
  %195 = vmatpush1.msra.mxu0 0.0
  %196 = vmatprep.subr.mxu0 0.0
  %197 = vmatpush1.msra.mxu0 0.0
  %198 = vmatprep.subr.mxu0 0.0
  %199 = vmatpush1.msra.mxu0 0.0
  %200 = vmatprep.subr.mxu0 0.0
  %201 = vmatpush1.msra.mxu0 0.0
  %202 = vmatprep.subr.mxu0 0.0
  %203 = vmatpush1.msra.mxu0 0.0
  %204 = vmatprep.subr.mxu0 0.0
  %205 = vmatpush1.msra.mxu0 0.0
  %206 = vmatprep.subr.mxu0 0.0
  %207 = vmatpush1.msra.mxu0 0.0
  %208 = vmatprep.subr.mxu0 0.0
  %209 = vmatpush1.msra.mxu0 0.0
  %210 = vmatprep.mubr.f32.mxu0 0.0
  %211 = vmatmul.mubr.f32.gmra.mrb[0].mxu0 %v144
  %v212 = vpop.f32.mrb[0].mxu0
  %v213 = vadd.f32 %v140, %v212
  %v214 = vpop.f32.mrb[0].mxu0
  %215 = vdwg.mxu0
  %vm216 = vcmask 15360
  %217 = vst.msk [vmem:[%s5] sm:$0xff] %vm216, %v213
  // Predicated region
  $region22: #{tpu_custom_call.1} parent=0 // pred_check
    _
  $region23: #{tpu_custom_call.1} parent=0 // pred_check_branch
    %219 = sbr.rel (0) target = $region25
  $region24: #{tpu_custom_call.1} parent=0 // pred_region
    _
  $region25: #{tpu_custom_call.1} parent=0 // pred_fallthru
    _
  // Predicated region
  $region26: #{tpu_custom_call.1} parent=0 // pred_check
    _
  $region27: #{tpu_custom_call.1} parent=0 // pred_check_branch
    %221 = sbr.rel (0) target = $region29
  $region28: #{tpu_custom_call.1} parent=0 // pred_region
    _
  $region29: #{tpu_custom_call.1} parent=0 // pred_fallthru
    _

</llo_original>
